<compile_context>
chip_gen: v7x
topology: tpu7x:2x2x1
jax: 0.10.0
libtpu: 0.0.40
codegen_flags: <defaults>
</compile_context>

<pallas_src>
import functools
import math

import jax
import jax.numpy as jnp
import numpy as np
from jax import lax
from jax.experimental import pallas as pl
from jax.experimental.pallas import tpu as pltpu


# ----------------------------- in-kernel helpers -----------------------------

def _mm(a, b):
    """a @ b with bf16 MXU operands and f32 accumulation."""
    return lax.dot_general(a.astype(jnp.bfloat16), b.astype(jnp.bfloat16),
                           (((1,), (0,)), ((), ())),
                           preferred_element_type=jnp.float32)


def _mm_nt(a, b):
    """a @ b.T with bf16 MXU operands and f32 accumulation."""
    return lax.dot_general(a.astype(jnp.bfloat16), b.astype(jnp.bfloat16),
                           (((1,), (1,)), ((), ())),
                           preferred_element_type=jnp.float32)


def _layernorm(x, w, b, eps=1e-5):
    mean = jnp.mean(x, axis=-1, keepdims=True)
    var = jnp.mean((x - mean) ** 2, axis=-1, keepdims=True)   # biased, like torch LN
    return (x - mean) * lax.rsqrt(var + eps) * w + b


def _gelu_tanh(x):
    # tanh-GELU: tanh runs on the (otherwise idle) EUP instead of ~10 VALU ops
    # per element of an erf polynomial; <~1e-3 deviation from exact erf GELU.
    c = math.sqrt(2.0 / math.pi)
    return 0.5 * x * (1.0 + jnp.tanh(c * (x + 0.044715 * (x * x * x))))


# ------------------------- kernel 1: K/V projection --------------------------

def kv_proj_kernel(x_ref, ln1w_ref, ln1b_ref, kw_ref, vw_ref, k_ref, v_ref):
    """LN1 + K/V projection for one (1, TS, C) sequence tile -> bf16 K, V."""
    xn = _layernorm(x_ref[0], ln1w_ref[0], ln1b_ref[0]).astype(jnp.bfloat16)
    k_ref[0] = _mm(xn, kw_ref[...]).astype(k_ref.dtype)
    v_ref[0] = _mm(xn, vw_ref[...]).astype(v_ref.dtype)


# --------------------------- kernel 2: main block -----------------------------

def nkat_block_kernel(scalar_ref,                 # SMEM (4,) f32: skip_a, skip_b, nkat_a, nkat_b
                      xq_ref,                     # (1, TQ, C) f32  query rows
                      k_ref, v_ref,               # (1, N, C) bf16  per-batch resident K / V
                      ln1w_ref, ln1b_ref,         # (1, C) f32
                      qw_ref,                     # (C, C) bf16  (W_q^T)
                      outw_ref, outb_ref,         # (C, C) bf16, (1, C) f32
                      ln2w_ref, ln2b_ref,         # (1, C) f32
                      w1_ref, b1_ref,             # (C, Hm) bf16, (1, Hm) f32
                      w2_ref, b2_ref,             # (Hm, C) bf16, (1, C) f32
                      o_ref,                      # (1, TQ, C) output tile
                      *, heads, head_dim, temperature,
                      nkat_strength, nkat_decay, layer_idx, exp_dtype):
    # fold 1/sqrt(head_dim) and 1/temperature into q; pos_bias (per-head scalar,
    # uniform over keys) cancels in softmax and is dropped.
    qk_scale = (head_dim ** -0.5) / max(temperature, 1e-8)

    skip_alpha = scalar_ref[0]
    skip_beta = scalar_ref[1]

    xq = xq_ref[0]                                   # (TQ, C) f32
    xnq = _layernorm(xq, ln1w_ref[0], ln1b_ref[0])   # (TQ, C) f32

    q = (_mm(xnq, qw_ref[...]) * qk_scale).astype(jnp.bfloat16)   # (TQ, C) bf16, cast once
    k = k_ref[0]                                     # (N, C) bf16
    v = v_ref[0]                                     # (N, C) bf16
    out_w = outw_ref[...]                            # (C, C) bf16

    # Per-head attention.  Softmax normalisation is applied AFTER the P.V
    # matmul (diag scaling commutes), and each head's (TQ, head_dim) output is
    # folded directly into the output projection: avoids a (TQ, C) VMEM scratch
    # round trip and masked sub-128-lane stores, with identical total MXU flops.
    # dropout(attn) is identity in inference mode.
    proj = None
    for h in range(heads):
        sl = slice(h * head_dim, (h + 1) * head_dim)
        s = _mm_nt(q[:, sl], k[:, sl])                           # (TQ, N) f32
        s = s - jnp.max(s, axis=-1, keepdims=True)
        p = jnp.exp(s.astype(exp_dtype))                         # bf16 EUP exp on v6e/v7x
        rsum = jnp.sum(p.astype(jnp.float32), axis=-1, keepdims=True)   # f32 accumulation
        o_h = _mm(p, v[:, sl]) * pl.reciprocal(rsum, approx=True)       # (TQ, hd) f32
        contrib = _mm(o_h, out_w[sl, :])                         # (TQ, C) f32
        proj = contrib if proj is None else proj + contrib

    # NKAT modulation is a per-query-row scale: diag(m).A.V.W == diag(m).(A.V.W),
    # so apply it once to the projected output (before the bias, matching
    # self.out(modulated) = modulated @ W + b in the PyTorch module).
    if nkat_strength > 0.0:
        layer_coeff = nkat_strength * (nkat_decay ** layer_idx)
        mu = jnp.mean(xnq, axis=-1, keepdims=True)
        var = jnp.mean((xnq - mu) ** 2, axis=-1, keepdims=True)  # unbiased=False
        theta = scalar_ref[2] * jnp.tanh(mu) + scalar_ref[3] * jax.nn.sigmoid(var)
        proj = proj * (1.0 + layer_coeff * theta)

    x1 = xq + skip_alpha * (proj + outb_ref[0])                  # residual 1

    # ---- MLP branch (hidden activation is only ever (TQ, Hm)) ----
    x1n = _layernorm(x1, ln2w_ref[0], ln2b_ref[0])
    hid = _gelu_tanh(_mm(x1n, w1_ref[...]) + b1_ref[0])          # dropout = identity
    y = _mm(hid, w2_ref[...]) + b2_ref[0]                        # dropout = identity
    o_ref[0] = (x1 + skip_beta * y).astype(o_ref.dtype)          # residual 2


# ------------------------------ wrapper helpers -------------------------------

def _pick_tile(n, max_tile):
    """Largest divisor of n that is a multiple of 8 and <= max_tile (else n)."""
    for t in range(min(n, max_tile), 7, -1):
        if n % t == 0 and t % 8 == 0:
            return t
    return n          # short / irregular sequences: single (full-extent) tile


def _vmem_limit_bytes():
    try:
        cap = pltpu.get_tpu_info().vmem_capacity_bytes
    except Exception:                               # older jax / unknown chip
        cap = 128 * 1024 * 1024
    # ~96 MiB on 128 MiB chips (v5e/v6e), ~48 MiB on 64 MiB chips (v7x);
    # leaves headroom for compiler scratch.
    return min((cap // 4) * 3, 100 * 1024 * 1024)


def _default_q_tile(vmem_limit):
    # Bigger tiles amortise the ~0.35us per-grid-step overhead; v7x gets 256.
    return 512 if vmem_limit >= 80 * 1024 * 1024 else 256


def _exp_dtype():
    # bf16 exp doubles EUP throughput on v6e/v7x; older chips keep f32.
    try:
        kind = jax.devices()[0].device_kind.lower()
    except Exception:
        kind = ""
    return jnp.bfloat16 if ("v6" in kind or "v7" in kind) else jnp.float32


def _block_spec(shape, index_map, *, single_buffer=False):
    """BlockSpec; grid-(near-)invariant blocks are single-buffered if supported."""
    if single_buffer:
        try:
            return pl.BlockSpec(shape, index_map, pipeline_mode=pl.Buffered(1))
        except (TypeError, AttributeError):          # jax without pipeline_mode
            pass
    return pl.BlockSpec(shape, index_map)


def _kv_projection(x, ln1_w, ln1_b, k_w, v_w, *, seq_tile, vmem_limit):
    """LN1 + K/V projection, computed exactly once per sequence (bf16 outputs)."""
    B, N, C = x.shape
    TS = _pick_tile(N, seq_tile)
    NS = N // TS
    grid_spec = pltpu.PrefetchScalarGridSpec(
        num_scalar_prefetch=0,
        grid=(B, NS),
        in_specs=[
            pl.BlockSpec((1, TS, C), lambda b, t: (b, t, 0)),
            _block_spec((1, C), lambda b, t: (0, 0), single_buffer=True),
            _block_spec((1, C), lambda b, t: (0, 0), single_buffer=True),
            _block_spec((C, C), lambda b, t: (0, 0), single_buffer=True),
            _block_spec((C, C), lambda b, t: (0, 0), single_buffer=True),
        ],
        out_specs=[
            pl.BlockSpec((1, TS, C), lambda b, t: (b, t, 0)),
            pl.BlockSpec((1, TS, C), lambda b, t: (b, t, 0)),
        ],
    )
    return pl.pallas_call(
        kv_proj_kernel,
        grid_spec=grid_spec,
        out_shape=(jax.ShapeDtypeStruct((B, N, C), jnp.bfloat16),
                   jax.ShapeDtypeStruct((B, N, C), jnp.bfloat16)),
        compiler_params=pltpu.CompilerParams(
            dimension_semantics=("parallel", "parallel"),
            vmem_limit_bytes=vmem_limit),
    )(x, ln1_w, ln1_b, k_w, v_w)


# ---------------------------------- wrapper -----------------------------------

def nkat_transformer_block(x, params, *, heads, temperature=1.0,
                           nkat_strength=0.0, nkat_decay=1.0, layer_idx=0,
                           q_tile=None, out_dtype=None):
    B, N, C = x.shape
    head_dim = C // heads
    Hm = params["mlp_w1"].shape[1]
    out_dtype = x.dtype if out_dtype is None else out_dtype   # bf16 halves HBM writes

    vmem_limit = _vmem_limit_bytes()
    if q_tile is None:
        q_tile = _default_q_tile(vmem_limit)
    TQ = _pick_tile(N, q_tile)
    NQ = N // TQ

    scalars = jnp.array([params["skip_alpha"], params["skip_beta"],
                         params["nkat_alpha"], params["nkat_beta"]], jnp.float32)

    # matmul weights in bf16 (f32 accumulation in-kernel); LN/biases stay f32.
    q_w = params["qkv_w_t"][:, 0:C].astype(jnp.bfloat16)
    k_w = params["qkv_w_t"][:, C:2 * C].astype(jnp.bfloat16)
    v_w = params["qkv_w_t"][:, 2 * C:3 * C].astype(jnp.bfloat16)
    out_w = params["out_w_t"].astype(jnp.bfloat16)
    w1 = params["mlp_w1"].astype(jnp.bfloat16)
    w2 = params["mlp_w2"].astype(jnp.bfloat16)

    # Kernel 1: K/V (and their LayerNorm) computed once, not per query tile.
    k_full, v_full = _kv_projection(x, params["ln1_w"], params["ln1_b"],
                                    k_w, v_w, seq_tile=max(q_tile, 256),
                                    vmem_limit=vmem_limit)

    kernel = functools.partial(
        nkat_block_kernel, heads=heads, head_dim=head_dim,
        temperature=temperature, nkat_strength=nkat_strength,
        nkat_decay=nkat_decay, layer_idx=layer_idx, exp_dtype=_exp_dtype())

    def const(shape):
        # grid-invariant block: same tile every step, resident, single-buffered.
        return _block_spec(shape, lambda *_: (0,) * len(shape), single_buffer=True)

    grid_spec = pltpu.PrefetchScalarGridSpec(
        num_scalar_prefetch=1,
        grid=(B, NQ),
        in_specs=[
            pl.BlockSpec((1, TQ, C), lambda b, q, s: (b, q, 0)),             # x query tile
            _block_spec((1, N, C), lambda b, q, s: (b, 0, 0), single_buffer=True),  # K (bf16)
            _block_spec((1, N, C), lambda b, q, s: (b, 0, 0), single_buffer=True),  # V (bf16)
            const((1, C)), const((1, C)),                                    # ln1 w, b
            const((C, C)),                                                   # q W^T (bf16)
            const((C, C)), const((1, C)),                                    # out W^T (bf16), bias
            const((1, C)), const((1, C)),                                    # ln2 w, b
            const((C, Hm)), const((1, Hm)),                                  # mlp W1^T (bf16), b1
            const((Hm, C)), const((1, C)),                                   # mlp W2^T (bf16), b2
        ],
        out_specs=pl.BlockSpec((1, TQ, C), lambda b, q, s: (b, q, 0)),
    )

    return pl.pallas_call(
        kernel,
        grid_spec=grid_spec,
        out_shape=jax.ShapeDtypeStruct((B, N, C), out_dtype),
        compiler_params=pltpu.CompilerParams(
            dimension_semantics=("parallel", "parallel"),
            vmem_limit_bytes=vmem_limit),
    )(scalars, x, k_full, v_full,
      params["ln1_w"], params["ln1_b"],
      q_w,
      out_w, params["out_b"],
      params["ln2_w"], params["ln2_b"],
      w1, params["mlp_b1"],
      w2, params["mlp_b2"])


# --------------------------- pure-JAX reference -------------------------------

def reference_block(x, params, *, heads, temperature=1.0,
                    nkat_strength=0.0, nkat_decay=1.0, layer_idx=0):
    B, N, C = x.shape
    hd = C // heads
    scale = hd ** -0.5
    hi = jax.lax.Precision.HIGHEST

    def ln(v, w, b, eps=1e-5):
        m = jnp.mean(v, -1, keepdims=True)
        var = jnp.mean((v - m) ** 2, -1, keepdims=True)
        return (v - m) / jnp.sqrt(var + eps) * w + b

    xn = ln(x, params["ln1_w"][0], params["ln1_b"][0])
    qkv = jnp.einsum("bnc,cd->bnd", xn, params["qkv_w_t"], precision=hi)
    qkv = qkv.reshape(B, N, 3, heads, hd)
    q, k, v = qkv[:, :, 0], qkv[:, :, 1], qkv[:, :, 2]
    q, k, v = (t.transpose(0, 2, 1, 3) for t in (q, k, v))       # (B,H,N,hd)

    scores = jnp.einsum("bhqd,bhkd->bhqk", q, k, precision=hi) * scale
    scores = scores + params["pos_bias"].reshape(1, heads, 1, 1)
    scores = scores / max(temperature, 1e-8)
    attn = jax.nn.softmax(scores, axis=-1)

    if nkat_strength > 0.0:
        coeff = nkat_strength * (nkat_decay ** layer_idx)
        tm = jnp.mean(xn, -1, keepdims=True)
        tv = jnp.mean((xn - tm) ** 2, -1, keepdims=True)
        theta = params["nkat_alpha"] * jnp.tanh(tm) + params["nkat_beta"] * jax.nn.sigmoid(tv)
        attn = attn * (1.0 + coeff * theta)[:, None, :, :]

    out = jnp.einsum("bhqk,bhkd->bhqd", attn, v, precision=hi)
    out = out.transpose(0, 2, 1, 3).reshape(B, N, C)
    proj = jnp.einsum("bnc,cd->bnd", out, params["out_w_t"], precision=hi) + params["out_b"][0]
    x1 = x + params["skip_alpha"] * proj

    x1n = ln(x1, params["ln2_w"][0], params["ln2_b"][0])
    h = jnp.einsum("bnc,ch->bnh", x1n, params["mlp_w1"], precision=hi) + params["mlp_b1"][0]
    h = jax.nn.gelu(h, approximate=False)
    y = jnp.einsum("bnh,hc->bnc", h, params["mlp_w2"], precision=hi) + params["mlp_b2"][0]
    return x1 + params["skip_beta"] * y


# ----------------------------------- main -------------------------------------

if __name__ == "__main__":
    HEADS = 4
    MLP_RATIO = 4.0
    TEMPERATURE = 0.8
    NKAT_STRENGTH = 0.5
    NKAT_DECAY = 0.9
    LAYER_IDX = 1

    def run_case(case_key, B, N, C, q_tile):
        HM = int(C * MLP_RATIO)
        keys = jax.random.split(case_key, 8)
        params = {
            "ln1_w": jnp.ones((1, C), jnp.float32),
            "ln1_b": jnp.zeros((1, C), jnp.float32),
            "qkv_w_t": 0.05 * jax.random.normal(keys[0], (C, 3 * C), jnp.float32),
            "out_w_t": 0.05 * jax.random.normal(keys[1], (C, C), jnp.float32),
            "out_b": 0.05 * jax.random.normal(keys[2], (1, C), jnp.float32),
            "ln2_w": jnp.ones((1, C), jnp.float32),
            "ln2_b": jnp.zeros((1, C), jnp.float32),
            "mlp_w1": 0.05 * jax.random.normal(keys[3], (C, HM), jnp.float32),
            "mlp_b1": 0.05 * jax.random.normal(keys[4], (1, HM), jnp.float32),
            "mlp_w2": 0.05 * jax.random.normal(keys[5], (HM, C), jnp.float32),
            "mlp_b2": 0.05 * jax.random.normal(keys[6], (1, C), jnp.float32),
            "skip_alpha": jnp.float32(1.0),
            "skip_beta": jnp.float32(1.0),
            "nkat_alpha": jnp.float32(0.1),
            "nkat_beta": jnp.float32(0.05),
            "pos_bias": jnp.zeros((HEADS,), jnp.float32),  # torch buffer zeros(1,H,1,1)
        }
        x = jax.random.normal(keys[7], (B, N, C), jnp.float32)

        out = nkat_transformer_block(
            x, params, heads=HEADS, temperature=TEMPERATURE,
            nkat_strength=NKAT_STRENGTH, nkat_decay=NKAT_DECAY,
            layer_idx=LAYER_IDX, q_tile=q_tile)
        out = jax.block_until_ready(out)

        ref = reference_block(
            x, params, heads=HEADS, temperature=TEMPERATURE,
            nkat_strength=NKAT_STRENGTH, nkat_decay=NKAT_DECAY,
            layer_idx=LAYER_IDX)
        ref = jax.block_until_ready(ref)

        # bf16 MXU operands / bf16 exp + tanh-GELU vs the f32 exact-erf reference.
        np.testing.assert_allclose(np.asarray(out), np.asarray(ref),
                                   rtol=2e-2, atol=2e-2)

    key = jax.random.PRNGKey(0)
    k1, k2 = jax.random.split(key)
    run_case(k1, B=2, N=8, C=32, q_tile=256)   # single query tile (TQ = N)
    run_case(k2, B=2, N=16, C=32, q_tile=8)    # multi-tile path (NQ = 2)
    print("KERNEL_OK")
</pallas_src>

<mosaic_0001>
module attributes {stable_mosaic.version = 11 : i64} {
  func.func @kv_proj_kernel(%arg0: i32, %arg1: i32, %arg2: memref<1x8x32xf32, #tpu.memory_space<vmem>>, %arg3: memref<1x32xf32, #tpu.memory_space<vmem>>, %arg4: memref<1x32xf32, #tpu.memory_space<vmem>>, %arg5: memref<32x32xbf16, #tpu.memory_space<vmem>>, %arg6: memref<32x32xbf16, #tpu.memory_space<vmem>>, %arg7: memref<1x8x32xbf16, #tpu.memory_space<vmem>>, %arg8: memref<1x8x32xbf16, #tpu.memory_space<vmem>>) attributes {dimension_semantics = [#tpu.dimension_semantics<parallel>, #tpu.dimension_semantics<parallel>], iteration_bounds = array<i64: 2, 1>, scalar_prefetch = 0 : i64, scratch_operands = 0 : i64, tpu.core_type = #tpu.core_type<tc>, window_params = [{transform_indices = @transform_0, window_bounds = array<i64: 1, 8, 32>}, {pipeline_mode = #tpu.pipeline_mode<synchronous>, transform_indices = @transform_1, window_bounds = array<i64: 1, 32>}, {pipeline_mode = #tpu.pipeline_mode<synchronous>, transform_indices = @transform_2, window_bounds = array<i64: 1, 32>}, {pipeline_mode = #tpu.pipeline_mode<synchronous>, transform_indices = @transform_3, window_bounds = array<i64: 32, 32>}, {pipeline_mode = #tpu.pipeline_mode<synchronous>, transform_indices = @transform_4, window_bounds = array<i64: 32, 32>}, {transform_indices = @transform_5, window_bounds = array<i64: 1, 8, 32>}, {transform_indices = @transform_6, window_bounds = array<i64: 1, 8, 32>}]} {
    %c0 = arith.constant 0 : index
    %c0_0 = arith.constant 0 : index
    %c0_1 = arith.constant 0 : index
    %0 = vector.load %arg2[%c0, %c0_0, %c0_1] : memref<1x8x32xf32, #tpu.memory_space<vmem>>, vector<1x8x32xf32>
    %1 = vector.shape_cast %0 : vector<1x8x32xf32> to vector<8x32xf32>
    %c0_2 = arith.constant 0 : index
    %c0_3 = arith.constant 0 : index
    %2 = vector.load %arg3[%c0_2, %c0_3] : memref<1x32xf32, #tpu.memory_space<vmem>>, vector<1x32xf32>
    %3 = vector.shape_cast %2 : vector<1x32xf32> to vector<32xf32>
    %c0_4 = arith.constant 0 : index
    %c0_5 = arith.constant 0 : index
    %4 = vector.load %arg4[%c0_4, %c0_5] : memref<1x32xf32, #tpu.memory_space<vmem>>, vector<1x32xf32>
    %5 = vector.shape_cast %4 : vector<1x32xf32> to vector<32xf32>
    %cst = arith.constant dense<0.000000e+00> : vector<8xf32>
    %6 = vector.multi_reduction <add>, %1, %cst [1] : vector<8x32xf32> to vector<8xf32>
    %7 = vector.shape_cast %6 : vector<8xf32> to vector<8x1xf32>
    %cst_6 = arith.constant 3.200000e+01 : f32
    %8 = vector.broadcast %cst_6 : f32 to vector<8x1xf32>
    %9 = arith.divf %7, %8 : vector<8x1xf32>
    %10 = vector.broadcast %9 : vector<8x1xf32> to vector<8x32xf32>
    %11 = arith.subf %1, %10 : vector<8x32xf32>
    %12 = arith.mulf %11, %11 : vector<8x32xf32>
    %cst_7 = arith.constant dense<0.000000e+00> : vector<8xf32>
    %13 = vector.multi_reduction <add>, %12, %cst_7 [1] : vector<8x32xf32> to vector<8xf32>
    %14 = vector.shape_cast %13 : vector<8xf32> to vector<8x1xf32>
    %cst_8 = arith.constant 3.200000e+01 : f32
    %15 = vector.broadcast %cst_8 : f32 to vector<8x1xf32>
    %16 = arith.divf %14, %15 : vector<8x1xf32>
    %17 = vector.broadcast %9 : vector<8x1xf32> to vector<8x32xf32>
    %18 = arith.subf %1, %17 : vector<8x32xf32>
    %cst_9 = arith.constant 9.99999974E-6 : f32
    %19 = vector.broadcast %cst_9 : f32 to vector<8x1xf32>
    %20 = arith.addf %16, %19 : vector<8x1xf32>
    %21 = math.rsqrt %20 : vector<8x1xf32>
    %22 = vector.broadcast %21 : vector<8x1xf32> to vector<8x32xf32>
    %23 = arith.mulf %18, %22 : vector<8x32xf32>
    %24 = vector.shape_cast %3 : vector<32xf32> to vector<1x32xf32>
    %25 = vector.broadcast %24 : vector<1x32xf32> to vector<8x32xf32>
    %26 = arith.mulf %23, %25 : vector<8x32xf32>
    %27 = vector.shape_cast %5 : vector<32xf32> to vector<1x32xf32>
    %28 = vector.broadcast %27 : vector<1x32xf32> to vector<8x32xf32>
    %29 = arith.addf %26, %28 : vector<8x32xf32>
    %30 = arith.truncf %29 : vector<8x32xf32> to vector<8x32xbf16>
    %c0_10 = arith.constant 0 : index
    %c0_11 = arith.constant 0 : index
    %31 = vector.load %arg5[%c0_10, %c0_11] : memref<32x32xbf16, #tpu.memory_space<vmem>>, vector<32x32xbf16>
    %cst_12 = arith.constant dense<0.000000e+00> : vector<8x32xf32>
    %32 = tpu.matmul %30, %31, %cst_12 {dimension_numbers = #tpu.dot_dimension_numbers<[1], [0], [0], [1], [0, 0, 1, 1], [], []>} : vector<8x32xbf16>, vector<32x32xbf16>, vector<8x32xf32> -> vector<8x32xf32>
    %33 = arith.truncf %32 : vector<8x32xf32> to vector<8x32xbf16>
    %c0_13 = arith.constant 0 : index
    %c0_14 = arith.constant 0 : index
    %c0_15 = arith.constant 0 : index
    %34 = vector.load %arg7[%c0_13, %c0_14, %c0_15] : memref<1x8x32xbf16, #tpu.memory_space<vmem>>, vector<1x8x32xbf16>
    %35 = vector.shape_cast %34 : vector<1x8x32xbf16> to vector<8x32xbf16>
    %36 = vector.shape_cast %33 : vector<8x32xbf16> to vector<1x8x32xbf16>
    tpu.vector_store %arg7[%c0_13, %c0_14, %c0_15], %36 {strides = array<i32>} : memref<1x8x32xbf16, #tpu.memory_space<vmem>>, vector<1x8x32xbf16>,
    %c0_16 = arith.constant 0 : index
    %c0_17 = arith.constant 0 : index
    %37 = vector.load %arg6[%c0_16, %c0_17] : memref<32x32xbf16, #tpu.memory_space<vmem>>, vector<32x32xbf16>
    %cst_18 = arith.constant dense<0.000000e+00> : vector<8x32xf32>
    %38 = tpu.matmul %30, %37, %cst_18 {dimension_numbers = #tpu.dot_dimension_numbers<[1], [0], [0], [1], [0, 0, 1, 1], [], []>} : vector<8x32xbf16>, vector<32x32xbf16>, vector<8x32xf32> -> vector<8x32xf32>
    %39 = arith.truncf %38 : vector<8x32xf32> to vector<8x32xbf16>
    %c0_19 = arith.constant 0 : index
    %c0_20 = arith.constant 0 : index
    %c0_21 = arith.constant 0 : index
    %40 = vector.load %arg8[%c0_19, %c0_20, %c0_21] : memref<1x8x32xbf16, #tpu.memory_space<vmem>>, vector<1x8x32xbf16>
    %41 = vector.shape_cast %40 : vector<1x8x32xbf16> to vector<8x32xbf16>
    %42 = vector.shape_cast %39 : vector<8x32xbf16> to vector<1x8x32xbf16>
    tpu.vector_store %arg8[%c0_19, %c0_20, %c0_21], %42 {strides = array<i32>} : memref<1x8x32xbf16, #tpu.memory_space<vmem>>, vector<1x8x32xbf16>,
    return
  }
  func.func @transform_0(%arg0: i32, %arg1: i32) -> (i32, i32, i32) {
    %c0_i32 = arith.constant 0 : i32
    %c0_i32_0 = arith.constant 0 : i32
    return %arg0, %arg1, %c0_i32 : i32, i32, i32
  }
  func.func @transform_1(%arg0: i32, %arg1: i32) -> (i32, i32) {
    %c0_i32 = arith.constant 0 : i32
    %c0_i32_0 = arith.constant 0 : i32
    %c0_i32_1 = arith.constant 0 : i32
    return %c0_i32, %c0_i32_0 : i32, i32
  }
  func.func @transform_2(%arg0: i32, %arg1: i32) -> (i32, i32) {
    %c0_i32 = arith.constant 0 : i32
    %c0_i32_0 = arith.constant 0 : i32
    %c0_i32_1 = arith.constant 0 : i32
    return %c0_i32, %c0_i32_0 : i32, i32
  }
  func.func @transform_3(%arg0: i32, %arg1: i32) -> (i32, i32) {
    %c0_i32 = arith.constant 0 : i32
    %c0_i32_0 = arith.constant 0 : i32
    %c0_i32_1 = arith.constant 0 : i32
    return %c0_i32, %c0_i32_0 : i32, i32
  }
  func.func @transform_4(%arg0: i32, %arg1: i32) -> (i32, i32) {
    %c0_i32 = arith.constant 0 : i32
    %c0_i32_0 = arith.constant 0 : i32
    %c0_i32_1 = arith.constant 0 : i32
    return %c0_i32, %c0_i32_0 : i32, i32
  }
  func.func @transform_5(%arg0: i32, %arg1: i32) -> (i32, i32, i32) {
    %c0_i32 = arith.constant 0 : i32
    %c0_i32_0 = arith.constant 0 : i32
    return %arg0, %arg1, %c0_i32 : i32, i32, i32
  }
  func.func @transform_6(%arg0: i32, %arg1: i32) -> (i32, i32, i32) {
    %c0_i32 = arith.constant 0 : i32
    %c0_i32_0 = arith.constant 0 : i32
    return %arg0, %arg1, %c0_i32 : i32, i32, i32
  }
}

</mosaic_0001>

<llo_original>
// kernel: tpu_custom_call.1
$region0: #{tpu_custom_call.1}
  #allocation0 [shape = 'u32[]', space=smem, size = 0x4, offset = 0x4, fixed_abs, tag = 'smem constant byte address 0x4 - core index']
  #allocation1 [shape = 'u32[144,128]{1,0:T(1,128)}', space=vmem, size = 0x12000, scoped, tag = 'internal scratch']
  %s0 = inlined_call_operand.hbm [shape: f32[2,8,32], index: 0, kind: input, shape index: {}]
  %s1 = inlined_call_operand.hbm [shape: f32[1,32], index: 1, kind: input, shape index: {}]
  %s2 = inlined_call_operand.hbm [shape: f32[1,32], index: 2, kind: input, shape index: {}]
  %s3 = inlined_call_operand.hbm [shape: bf16[32,32], index: 3, kind: input, shape index: {}]
  %s4 = inlined_call_operand.hbm [shape: bf16[32,32], index: 4, kind: input, shape index: {}]
  %s5 = inlined_call_operand.hbm [shape: bf16[2,8,32], index: 5, kind: output, shape index: {0}]
  %s6 = inlined_call_operand.hbm [shape: bf16[2,8,32], index: 6, kind: output, shape index: {1}]
  %7 = xla_tuple %s5, %s6
  %s8 = sld [smem:[#allocation0]]
  $region81: #{tpu_custom_call.1} parent=0
    _
  %s10 = ssub.s32 1, %s8
  %s11 = scalar_select 0, %s10, %s8
  $region1: #{tpu_custom_call.1} parent=0
    #allocation2 [shape = 'u8[8192]{0}', space=vmem, size = 0x2000, scoped, tag = 'input window, operand 0']
    #allocation3 [shape = 's32[2]{0}', space=sflag, size = 0x8, scoped, tag = 'scoped memory for tpu_custom_call.1']
    #allocation4 [shape = 's32[2]{0}', space=sflag, size = 0x8, scoped, tag = 'scoped memory for tpu_custom_call.1']
    #allocation5 [shape = 'u8[512]{0}', space=vmem, size = 0x400, scoped, tag = 'input window, operand 1, single buffered']
    #allocation6 [shape = 's32[1]{0}', space=sflag, size = 0x4, scoped, tag = 'scoped memory for tpu_custom_call.1']
    #allocation7 [shape = 'u8[512]{0}', space=vmem, size = 0x400, scoped, tag = 'input window, operand 2, single buffered']
    #allocation8 [shape = 'u8[8192]{0}', space=vmem, size = 0x2000, scoped, tag = 'input window, operand 3, single buffered']
    #allocation9 [shape = 's32[1]{0}', space=sflag, size = 0x4, scoped, tag = 'scoped memory for tpu_custom_call.1']
    #allocation10 [shape = 'u8[8192]{0}', space=vmem, size = 0x2000, scoped, tag = 'input window, operand 4, single buffered']
    #allocation11 [shape = 'u8[4096]{0}', space=vmem, size = 0x1000, scoped, tag = 'output window, operand 0']
    #allocation12 [shape = 'u8[4096]{0}', space=vmem, size = 0x1000, scoped, tag = 'output window, operand 1']
    #allocation13 [shape = 's32[2]{0}', space=sflag, size = 0x8, scoped, tag = 'scoped memory for tpu_custom_call.1']
    %12 = vsyncpa [#allocation3], 0
    %s13 = scalar_lea.sflag [#allocation3], 1
    %14 = vsyncpa %s13, 0
    %15 = vsyncpa [#allocation6], 0
    %16 = vsyncpa [#allocation9], 0
    %17 = vsyncpa [#allocation4], 0
    %s18 = scalar_lea.sflag [#allocation4], 1
    %19 = vsyncpa %s18, 0
    %20 = vsyncpa [#allocation13], 0
    %s21 = scalar_lea.sflag [#allocation13], 1
    %22 = vsyncpa %s21, 0
    loop: start=0, step=1, limit=4
    $region2: #{tpu_custom_call.1} parent=1 // loop_pre_header
      _
    $region3: #{tpu_custom_call.1} parent=1 // loop_header
      %s24 = sphi 0, %s28
      %p25 = scmp.ge.s32.totalorder %s24, 4
      %s31 = sphi 0, %s43
      %s32 = sphi 0, %s39
      %s33 = sphi 0, %s31
      %s34 = sphi 0, %s32
      %s35 = sphi 0, %s33
      %s36 = sphi 0, %s34
      %s48 = sphi 0, %s50
      %s51 = sphi 0, %s48
      %s52 = sphi 0, %s51
      %s68 = sphi 0, %s52
      %s72 = sphi 0, %s72
      %s74 = sphi 0, %s72
      %s75 = sphi 0, %s74
      %s89 = sphi 0, %s75
      %s93 = sphi 0, %s93
      %s95 = sphi 0, %s93
      %s96 = sphi 0, %s95
      %s110 = sphi 0, %s96
      %s114 = sphi 0, %s114
      %s116 = sphi 0, %s114
      %s117 = sphi 0, %s116
      %s131 = sphi 0, %s117
      %s135 = sphi 0, %s135
      %s137 = sphi 0, %s135
      %s138 = sphi 0, %s137
      %s152 = sphi 0, %s138
      %s160 = sphi 0, %s162
      %s163 = sphi 0, %s160
      %s164 = sphi 0, %s163
      %s180 = sphi 0, %s164
      %s188 = sphi 0, %s190
      %s191 = sphi 0, %s188
      %s192 = sphi 0, %s191
      %s208 = sphi 0, %s192
    $region4: #{tpu_custom_call.1} parent=1 // loop_header_branch
      %27 = sbr.rel (%p25) target = $region8
    $region5: #{tpu_custom_call.1} parent=1 // loop_body
      %s29 = ssub.s32 %s24, 1
      %s30 = ssub.s32 %s24, 2
      %s37 = sadd.s32 1, %s32
      %p38 = scmp.ge.s32.totalorder %s37, 1
      %s39 = scalar_select %p38, 0, %s37
      %s40 = sadd.s32 1, %s31
      %s41 = scalar_select %p38, %s40, %s31
      %p42 = scmp.ge.s32.totalorder %s41, 2
      %s43 = scalar_select %p42, 0, %s41
      %s44 = ssub.s32 %s31, %s43
      %s45 = ssub.s32 %s32, %s39
      %s46 = sor.u32 %s44, %s45
      %p47 = scmp.eq.s32.totalorder %s46, 0
      %s49 = sadd.s32 %s48, 1
      %s50 = scalar_select %p47, %s48, %s49
      %p53 = pneg %p47
      %p54 = scmp.eq.s32.totalorder %s24, 1
      %p55 = por %p53, %p54
      %p56 = scmp.ne.s32.totalorder %s48, %s51
      %p57 = scmp.eq.s32.totalorder %s24, 0
      %p58 = por %p56, %p57
      %p59 = scmp.ne.s32.totalorder %s48, %s51
      %p60 = scmp.eq.s32.totalorder %s29, 1
      %p61 = por %p59, %p60
      %p62 = scmp.ne.s32.totalorder %s51, %s52
      %p63 = scmp.eq.s32.totalorder %s29, 0
      %p64 = por %p62, %p63
      %p65 = scmp.ne.s32.totalorder %s51, %s52
      %p66 = scmp.eq.s32.totalorder %s30, 1
      %p67 = por %p65, %p66
      %p69 = scmp.ne.s32.totalorder %s52, %s68
      %p70 = scmp.eq.s32.totalorder %s30, 0
      %p71 = por %p69, %p70
      %s73 = sadd.s32 %s72, 1
      %p76 = scmp.eq.s32.totalorder %s24, 1
      %p77 = scmp.ne.s32.totalorder %s72, %s74
      %p78 = scmp.eq.s32.totalorder %s24, 0
      %p79 = por %p77, %p78
      %p80 = scmp.ne.s32.totalorder %s72, %s74
      %p81 = scmp.eq.s32.totalorder %s29, 1
      %p82 = por %p80, %p81
      %p83 = scmp.ne.s32.totalorder %s74, %s75
      %p84 = scmp.eq.s32.totalorder %s29, 0
      %p85 = por %p83, %p84
      %p86 = scmp.ne.s32.totalorder %s74, %s75
      %p87 = scmp.eq.s32.totalorder %s30, 1
      %p88 = por %p86, %p87
      %p90 = scmp.ne.s32.totalorder %s75, %s89
      %p91 = scmp.eq.s32.totalorder %s30, 0
      %p92 = por %p90, %p91
      %s94 = sadd.s32 %s93, 1
      %p97 = scmp.eq.s32.totalorder %s24, 1
      %p98 = scmp.ne.s32.totalorder %s93, %s95
      %p99 = scmp.eq.s32.totalorder %s24, 0
      %p100 = por %p98, %p99
      %p101 = scmp.ne.s32.totalorder %s93, %s95
      %p102 = scmp.eq.s32.totalorder %s29, 1
      %p103 = por %p101, %p102
      %p104 = scmp.ne.s32.totalorder %s95, %s96
      %p105 = scmp.eq.s32.totalorder %s29, 0
      %p106 = por %p104, %p105
      %p107 = scmp.ne.s32.totalorder %s95, %s96
      %p108 = scmp.eq.s32.totalorder %s30, 1
      %p109 = por %p107, %p108
      %p111 = scmp.ne.s32.totalorder %s96, %s110
      %p112 = scmp.eq.s32.totalorder %s30, 0
      %p113 = por %p111, %p112
      %s115 = sadd.s32 %s114, 1
      %p118 = scmp.eq.s32.totalorder %s24, 1
      %p119 = scmp.ne.s32.totalorder %s114, %s116
      %p120 = scmp.eq.s32.totalorder %s24, 0
      %p121 = por %p119, %p120
      %p122 = scmp.ne.s32.totalorder %s114, %s116
      %p123 = scmp.eq.s32.totalorder %s29, 1
      %p124 = por %p122, %p123
      %p125 = scmp.ne.s32.totalorder %s116, %s117
      %p126 = scmp.eq.s32.totalorder %s29, 0
      %p127 = por %p125, %p126
      %p128 = scmp.ne.s32.totalorder %s116, %s117
      %p129 = scmp.eq.s32.totalorder %s30, 1
      %p130 = por %p128, %p129
      %p132 = scmp.ne.s32.totalorder %s117, %s131
      %p133 = scmp.eq.s32.totalorder %s30, 0
      %p134 = por %p132, %p133
      %s136 = sadd.s32 %s135, 1
      %p139 = scmp.eq.s32.totalorder %s24, 1
      %p140 = scmp.ne.s32.totalorder %s135, %s137
      %p141 = scmp.eq.s32.totalorder %s24, 0
      %p142 = por %p140, %p141
      %p143 = scmp.ne.s32.totalorder %s135, %s137
      %p144 = scmp.eq.s32.totalorder %s29, 1
      %p145 = por %p143, %p144
      %p146 = scmp.ne.s32.totalorder %s137, %s138
      %p147 = scmp.eq.s32.totalorder %s29, 0
      %p148 = por %p146, %p147
      %p149 = scmp.ne.s32.totalorder %s137, %s138
      %p150 = scmp.eq.s32.totalorder %s30, 1
      %p151 = por %p149, %p150
      %p153 = scmp.ne.s32.totalorder %s138, %s152
      %p154 = scmp.eq.s32.totalorder %s30, 0
      %p155 = por %p153, %p154
      %s156 = ssub.s32 %s31, %s43
      %s157 = ssub.s32 %s32, %s39
      %s158 = sor.u32 %s156, %s157
      %p159 = scmp.eq.s32.totalorder %s158, 0
      %s161 = sadd.s32 %s160, 1
      %s162 = scalar_select %p159, %s160, %s161
      %p165 = pneg %p159
      %p166 = scmp.eq.s32.totalorder %s24, 1
      %p167 = por %p165, %p166
      %p168 = scmp.ne.s32.totalorder %s160, %s163
      %p169 = scmp.eq.s32.totalorder %s24, 0
      %p170 = por %p168, %p169
      %p171 = scmp.ne.s32.totalorder %s160, %s163
      %p172 = scmp.eq.s32.totalorder %s29, 1
      %p173 = por %p171, %p172
      %p174 = scmp.ne.s32.totalorder %s163, %s164
      %p175 = scmp.eq.s32.totalorder %s29, 0
      %p176 = por %p174, %p175
      %p177 = scmp.ne.s32.totalorder %s163, %s164
      %p178 = scmp.eq.s32.totalorder %s30, 1
      %p179 = por %p177, %p178
      %p181 = scmp.ne.s32.totalorder %s164, %s180
      %p182 = scmp.eq.s32.totalorder %s30, 0
      %p183 = por %p181, %p182
      %s184 = ssub.s32 %s31, %s43
      %s185 = ssub.s32 %s32, %s39
      %s186 = sor.u32 %s184, %s185
      %p187 = scmp.eq.s32.totalorder %s186, 0
      %s189 = sadd.s32 %s188, 1
      %s190 = scalar_select %p187, %s188, %s189
      %p193 = pneg %p187
      %p194 = scmp.eq.s32.totalorder %s24, 1
      %p195 = por %p193, %p194
      %p196 = scmp.ne.s32.totalorder %s188, %s191
      %p197 = scmp.eq.s32.totalorder %s24, 0
      %p198 = por %p196, %p197
      %p199 = scmp.ne.s32.totalorder %s188, %s191
      %p200 = scmp.eq.s32.totalorder %s29, 1
      %p201 = por %p199, %p200
      %p202 = scmp.ne.s32.totalorder %s191, %s192
      %p203 = scmp.eq.s32.totalorder %s29, 0
      %p204 = por %p202, %p203
      %p205 = scmp.ne.s32.totalorder %s191, %s192
      %p206 = scmp.eq.s32.totalorder %s30, 1
      %p207 = por %p205, %p206
      %p209 = scmp.ne.s32.totalorder %s192, %s208
      %p210 = scmp.eq.s32.totalorder %s30, 0
      %p211 = por %p209, %p210
      %p212 = scmp.le.s32.totalorder 1, %s24
      %p213 = scmp.lt.s32.totalorder %s24, 3
      %p214 = pnand %p212, %p213
      %p215 = pneg %p214
      // Predicated region
      $region9: #{tpu_custom_call.1} parent=5 // pred_check
        _
      $region10: #{tpu_custom_call.1} parent=5 // pred_check_branch
        %217 = sbr.rel (%p214) target = $region12
      $region11: #{tpu_custom_call.1} parent=5 // pred_region
        %s218 = ssub.s32 %s24, 1
        // Predicated region
        $region13: #{tpu_custom_call.1} parent=11 // pred_check
          %p219 = pneg %p85
        $region14: #{tpu_custom_call.1} parent=11 // pred_check_branch
          %221 = sbr.rel (%p219) target = $region16
        $region15: #{tpu_custom_call.1} parent=11 // pred_region
          %s223 = ssub.s32 16, 16
          %224 = vsyncadd [#allocation6], %s223
          %s226 = sshll.u32 [#allocation5], 4
          %s227 = int_to_ptr.vmem [resolvable:$true] %s226
          %229 = dma.hbm_to_vmem [thread:$0]  %s1, 16, %s227, [#allocation6]
        $region16: #{tpu_custom_call.1} parent=11 // pred_fallthru
          _
        // Predicated region
        $region17: #{tpu_custom_call.1} parent=11 // pred_check
          %p230 = pneg %p106
        $region18: #{tpu_custom_call.1} parent=11 // pred_check_branch
          %232 = sbr.rel (%p230) target = $region20
        $region19: #{tpu_custom_call.1} parent=11 // pred_region
          %s234 = ssub.s32 16, 16
          %235 = vsyncadd [#allocation6], %s234
          %s237 = sshll.u32 [#allocation7], 4
          %s238 = int_to_ptr.vmem [resolvable:$true] %s237
          %240 = dma.hbm_to_vmem [thread:$0]  %s2, 16, %s238, [#allocation6]
        $region20: #{tpu_custom_call.1} parent=11 // pred_fallthru
          _
        // Predicated region
        $region21: #{tpu_custom_call.1} parent=11 // pred_check
          %p241 = pneg %p127
        $region22: #{tpu_custom_call.1} parent=11 // pred_check_branch
          %243 = sbr.rel (%p241) target = $region24
        $region23: #{tpu_custom_call.1} parent=11 // pred_region
          %s245 = ssub.s32 256, 256
          %246 = vsyncadd [#allocation9], %s245
          %s247 = sshll.u32 [#allocation8], 4
          %s248 = int_to_ptr.vmem [resolvable:$true] %s247
          %253 = dma.hbm_to_vmem [thread:$0]  %s3, 256, %s248, [#allocation9], 64, 64, 4
        $region24: #{tpu_custom_call.1} parent=11 // pred_fallthru
          _
        // Predicated region
        $region25: #{tpu_custom_call.1} parent=11 // pred_check
          %p254 = pneg %p148
        $region26: #{tpu_custom_call.1} parent=11 // pred_check_branch
          %256 = sbr.rel (%p254) target = $region28
        $region27: #{tpu_custom_call.1} parent=11 // pred_region
          %s258 = ssub.s32 256, 256
          %259 = vsyncadd [#allocation9], %s258
          %s260 = sshll.u32 [#allocation10], 4
          %s261 = int_to_ptr.vmem [resolvable:$true] %s260
          %266 = dma.hbm_to_vmem [thread:$0]  %s4, 256, %s261, [#allocation9], 64, 64, 4
        $region28: #{tpu_custom_call.1} parent=11 // pred_fallthru
          _
      $region12: #{tpu_custom_call.1} parent=5 // pred_fallthru
        _
      %p267 = scmp.lt.s32.totalorder %s24, 2
      // Predicated region
      $region29: #{tpu_custom_call.1} parent=5 // pred_check
        %p268 = pneg %p267
      $region30: #{tpu_custom_call.1} parent=5 // pred_check_branch
        %270 = sbr.rel (%p268) target = $region32
      $region31: #{tpu_custom_call.1} parent=5 // pred_region
        // Predicated region
        $region33: #{tpu_custom_call.1} parent=31 // pred_check
          %p271 = pneg %p58
        $region34: #{tpu_custom_call.1} parent=31 // pred_check_branch
          %273 = sbr.rel (%p271) target = $region36
        $region35: #{tpu_custom_call.1} parent=31 // pred_region
          %s274 = sand.u32 %s48, 1
          %s275 = scalar_lea.sflag [#allocation3], %s274
          %s276 = sand.u32 %s48, 1
          %s277 = smul.addr %s276, 8
          %s278 = scalar_lea.vmem [#allocation2], %s277
          %s280 = ssub.s32 128, 128
          %281 = vsyncadd %s275, %s280
          %s282 = sadd.s32 %s32, %s31
          %s283 = smul.addr %s282, 128
          %s284 = scalar_lea.hbm %s0, %s283
          %s286 = sshll.u32 %s278, 4
          %s287 = int_to_ptr.vmem [resolvable:$true] %s286
          %289 = dma.hbm_to_vmem [thread:$0]  %s284, 128, %s287, %s275
        $region36: #{tpu_custom_call.1} parent=31 // pred_fallthru
          _
      $region32: #{tpu_custom_call.1} parent=5 // pred_fallthru
        _
      %p290 = scmp.le.s32.totalorder 1, %s24
      %p291 = scmp.lt.s32.totalorder %s24, 3
      %p292 = pnand %p290, %p291
      %p293 = pneg %p292
      // Predicated region
      $region37: #{tpu_custom_call.1} parent=5 // pred_check
        _
      $region38: #{tpu_custom_call.1} parent=5 // pred_check_branch
        %295 = sbr.rel (%p292) target = $region40
      $region39: #{tpu_custom_call.1} parent=5 // pred_region
        %s296 = ssub.s32 %s24, 1
        %s297 = sand.u32 %s51, 1
        %s298 = scalar_lea.sflag [#allocation3], %s297
        %s299 = sand.u32 %s51, 1
        %s300 = smul.addr %s299, 8
        %s301 = scalar_lea.vmem [#allocation2], %s300
        // Predicated region
        $region41: #{tpu_custom_call.1} parent=39 // pred_check
          %p302 = pneg %p64
        $region42: #{tpu_custom_call.1} parent=39 // pred_check_branch
          %304 = sbr.rel (%p302) target = $region44
        $region43: #{tpu_custom_call.1} parent=39 // pred_region
          %305 = dma.done %s298, 128
        $region44: #{tpu_custom_call.1} parent=39 // pred_fallthru
          _
        // Predicated region
        $region45: #{tpu_custom_call.1} parent=39 // pred_check
          %p306 = pneg %p85
        $region46: #{tpu_custom_call.1} parent=39 // pred_check_branch
          %308 = sbr.rel (%p306) target = $region48
        $region47: #{tpu_custom_call.1} parent=39 // pred_region
          %309 = dma.done [#allocation6], 16
        $region48: #{tpu_custom_call.1} parent=39 // pred_fallthru
          _
        // Predicated region
        $region49: #{tpu_custom_call.1} parent=39 // pred_check
          %p310 = pneg %p106
        $region50: #{tpu_custom_call.1} parent=39 // pred_check_branch
          %312 = sbr.rel (%p310) target = $region52
        $region51: #{tpu_custom_call.1} parent=39 // pred_region
          %313 = dma.done [#allocation6], 16
        $region52: #{tpu_custom_call.1} parent=39 // pred_fallthru
          _
        // Predicated region
        $region53: #{tpu_custom_call.1} parent=39 // pred_check
          %p314 = pneg %p127
        $region54: #{tpu_custom_call.1} parent=39 // pred_check_branch
          %316 = sbr.rel (%p314) target = $region56
        $region55: #{tpu_custom_call.1} parent=39 // pred_region
          %317 = dma.done [#allocation9], 256
        $region56: #{tpu_custom_call.1} parent=39 // pred_fallthru
          _
        // Predicated region
        $region57: #{tpu_custom_call.1} parent=39 // pred_check
          %p318 = pneg %p148
        $region58: #{tpu_custom_call.1} parent=39 // pred_check_branch
          %320 = sbr.rel (%p318) target = $region60
        $region59: #{tpu_custom_call.1} parent=39 // pred_region
          %321 = dma.done [#allocation9], 256
        $region60: #{tpu_custom_call.1} parent=39 // pred_fallthru
          _
        %s322 = sand.u32 %s51, 1
        %s323 = scalar_lea.sflag [#allocation3], %s322
        %s324 = sand.u32 %s51, 1
        %s325 = smul.addr %s324, 8
        %s326 = scalar_lea.vmem [#allocation2], %s325
        %p327 = pneg %p64
        %p328 = pneg %p61
        %p329 = pneg %p85
        %p330 = pneg %p82
        %p331 = pneg %p106
        %p332 = pneg %p103
        %p333 = pneg %p127
        %p334 = pneg %p124
        %p335 = pneg %p148
        %p336 = pneg %p145
        %p337 = pneg %p176
        %p338 = pneg %p173
        %s339 = sand.u32 %s163, 1
        %s340 = scalar_lea.sflag [#allocation4], %s339
        %s341 = sand.u32 %s163, 1
        %s342 = smul.addr %s341, 4
        %s343 = scalar_lea.vmem [#allocation11], %s342
        %p344 = pneg %p204
        %p345 = pneg %p201
        %s346 = sand.u32 %s191, 1
        %s347 = scalar_lea.sflag [#allocation13], %s346
        %s348 = sand.u32 %s191, 1
        %s349 = smul.addr %s348, 4
        %s350 = scalar_lea.vmem [#allocation12], %s349
        %v352 = vld [vmem:[%s301] sm:$0xff]
        %v353 = vld [vmem:[#allocation5] sm:$0x1]
        %v354 = vld [vmem:[#allocation7] sm:$0x1]
        %vm355 = vcmask 261120
        %v356 = vsel %vm355, %v352, 0.0
        %357 = vadd.xlane.f32.xlu0 %v356
        %v358 = vpop.xlane.xlu0 %357
        %v359 = vrcp.pop 32.0
        %v360 = vmul.f32 %v358, %v359
        %v361 = vsub.f32 %v352, %v360
        %v362 = vmul.f32 %v361, %v361
        %v363 = vsel %vm355, %v362, 0.0
        %364 = vadd.xlane.f32.xlu0 %v363
        %v365 = vpop.xlane.xlu0 %364
        %v366 = vmul.f32 %v365, %v359
        %v367 = vadd.f32 %v366, 1e-05
        %v368 = vrsqrt.pop %v367
        %v369 = vmul.f32 %v361, %v368
        %v371 = vlaneseq
        %v372 = vshrl.u32 %v371, 7
        %v373 = vsub.s32 0, %v372
        %v374 = vrot.slane %v353, %v373
        %v376 = vmul.f32 %v369, %v374
        %v378 = vlaneseq
        %v379 = vshrl.u32 %v378, 7
        %v380 = vsub.s32 0, %v379
        %v381 = vrot.slane %v354, %v380
        %v383 = vadd.f32 %v376, %v381
        %v384 = vpack.c.bf16 %v383, %v383
        %v385 = vld [vmem:[#allocation8] sm:$0xf]
        %v386 = vld [vmem:[#allocation8 + $0x4] sm:$0xf]
        %v387 = vld [vmem:[#allocation8 + $0x8] sm:$0xf]
        %v388 = vld [vmem:[#allocation8 + $0xc] sm:$0xf]
        %v393 = vunpack.c.l.b16 %v385
        %v394 = vunpack.c.l.b16 %v386
        %v395 = vunpack.c.l.b16 %v387
        %v396 = vunpack.c.l.b16 %v388
        %v397 = vpack.c.b16 %v394, %v393
        %v398 = vpack.c.b16 %v396, %v395
        %v402 = vsel %vm355, %v384, 0
        %404 = vmatprep.subr.bf16.mxu0 0
        %405 = vmatpush1.bf16.msra.mxu0 %v397
        %406 = vmatprep.subr.bf16.mxu0 0
        %407 = vmatpush1.bf16.msra.mxu0 %v398
        %408 = vmatprep.subr.bf16.mxu0 0
        %409 = vmatpush1.bf16.msra.mxu0 0
        %410 = vmatprep.subr.bf16.mxu0 0
        %411 = vmatpush1.bf16.msra.mxu0 0
        %412 = vmatprep.subr.bf16.mxu0 0
        %413 = vmatpush1.bf16.msra.mxu0 0
        %414 = vmatprep.subr.bf16.mxu0 0
        %415 = vmatpush1.bf16.msra.mxu0 0
        %416 = vmatprep.subr.bf16.mxu0 0
        %417 = vmatpush1.bf16.msra.mxu0 0
        %418 = vmatprep.subr.bf16.mxu0 0
        %419 = vmatpush1.bf16.msra.mxu0 0
        %420 = vmatprep.subr.bf16.mxu0 0
        %421 = vmatpush1.bf16.msra.mxu0 0
        %422 = vmatprep.subr.bf16.mxu0 0
        %423 = vmatpush1.bf16.msra.mxu0 0
        %424 = vmatprep.subr.bf16.mxu0 0
        %425 = vmatpush1.bf16.msra.mxu0 0
        %426 = vmatprep.subr.bf16.mxu0 0
        %427 = vmatpush1.bf16.msra.mxu0 0
        %428 = vmatprep.subr.bf16.mxu0 0
        %429 = vmatpush1.bf16.msra.mxu0 0
        %430 = vmatprep.subr.bf16.mxu0 0
        %431 = vmatpush1.bf16.msra.mxu0 0
        %432 = vmatprep.subr.bf16.mxu0 0
        %433 = vmatpush1.bf16.msra.mxu0 0
        %434 = vmatprep.subr.bf16.mxu0 0
        %435 = vmatpush1.bf16.msra.mxu0 0
        %436 = vmatprep.mubr.bf16.mxu0 0
        %437 = vmatmul.mubr.bf16.gmra.mrb[0].mxu0 %v402
        %v438 = vpop.f32.mrb[0].mxu0
        %v439 = vadd.f32 0.0, %v438
        %v440 = vpop.f32.mrb[0].mxu0
        %v441 = vpop.f32.mrb[0].mxu0
        %v442 = vpop.f32.mrb[0].mxu0
        %443 = vdwg.mxu0
        %v444 = vpack.c.bf16 %v439, %v439
        %vm445 = vcmask 257024
        %446 = vst.msk [vmem:[%s343] sm:$0xf] %vm445, %v444
        %v447 = vld [vmem:[#allocation10] sm:$0xf]
        %v448 = vld [vmem:[#allocation10 + $0x4] sm:$0xf]
        %v449 = vld [vmem:[#allocation10 + $0x8] sm:$0xf]
        %v450 = vld [vmem:[#allocation10 + $0xc] sm:$0xf]
        %v455 = vunpack.c.l.b16 %v447
        %v456 = vunpack.c.l.b16 %v448
        %v457 = vunpack.c.l.b16 %v449
        %v458 = vunpack.c.l.b16 %v450
        %v459 = vpack.c.b16 %v456, %v455
        %v460 = vpack.c.b16 %v458, %v457
        %463 = vmatprep.subr.bf16.mxu0 0
        %464 = vmatpush1.bf16.msra.mxu0 %v459
        %465 = vmatprep.subr.bf16.mxu0 0
        %466 = vmatpush1.bf16.msra.mxu0 %v460
        %467 = vmatprep.subr.bf16.mxu0 0
        %468 = vmatpush1.bf16.msra.mxu0 0
        %469 = vmatprep.subr.bf16.mxu0 0
        %470 = vmatpush1.bf16.msra.mxu0 0
        %471 = vmatprep.subr.bf16.mxu0 0
        %472 = vmatpush1.bf16.msra.mxu0 0
        %473 = vmatprep.subr.bf16.mxu0 0
        %474 = vmatpush1.bf16.msra.mxu0 0
        %475 = vmatprep.subr.bf16.mxu0 0
        %476 = vmatpush1.bf16.msra.mxu0 0
        %477 = vmatprep.subr.bf16.mxu0 0
        %478 = vmatpush1.bf16.msra.mxu0 0
        %479 = vmatprep.subr.bf16.mxu0 0
        %480 = vmatpush1.bf16.msra.mxu0 0
        %481 = vmatprep.subr.bf16.mxu0 0
        %482 = vmatpush1.bf16.msra.mxu0 0
        %483 = vmatprep.subr.bf16.mxu0 0
        %484 = vmatpush1.bf16.msra.mxu0 0
        %485 = vmatprep.subr.bf16.mxu0 0
        %486 = vmatpush1.bf16.msra.mxu0 0
        %487 = vmatprep.subr.bf16.mxu0 0
        %488 = vmatpush1.bf16.msra.mxu0 0
        %489 = vmatprep.subr.bf16.mxu0 0
        %490 = vmatpush1.bf16.msra.mxu0 0
        %491 = vmatprep.subr.bf16.mxu0 0
        %492 = vmatpush1.bf16.msra.mxu0 0
        %493 = vmatprep.subr.bf16.mxu0 0
        %494 = vmatpush1.bf16.msra.mxu0 0
        %495 = vmatprep.mubr.bf16.mxu0 0
        %496 = vmatmul.mubr.bf16.gmra.mrb[0].mxu0 %v402
        %v497 = vpop.f32.mrb[0].mxu0
        %v498 = vadd.f32 0.0, %v497
        %v499 = vpop.f32.mrb[0].mxu0
        %v500 = vpop.f32.mrb[0].mxu0
        %v501 = vpop.f32.mrb[0].mxu0
        %502 = vdwg.mxu0
        %v503 = vpack.c.bf16 %v498, %v498
        %504 = vst.msk [vmem:[%s350] sm:$0xf] %vm445, %v503
        %s505 = sand.u32 %s163, 1
        %s506 = scalar_lea.sflag [#allocation4], %s505
        %s507 = sand.u32 %s163, 1
        %s508 = smul.addr %s507, 4
        %s509 = scalar_lea.vmem [#allocation11], %s508
        %s510 = sand.u32 %s191, 1
        %s511 = scalar_lea.sflag [#allocation13], %s510
        %s512 = sand.u32 %s191, 1
        %s513 = smul.addr %s512, 4
        %s514 = scalar_lea.vmem [#allocation12], %s513
        // Predicated region
        $region61: #{tpu_custom_call.1} parent=39 // pred_check
          %p515 = pneg %p173
        $region62: #{tpu_custom_call.1} parent=39 // pred_check_branch
          %517 = sbr.rel (%p515) target = $region64
        $region63: #{tpu_custom_call.1} parent=39 // pred_region
          %s519 = ssub.s32 64, 64
          %520 = vsyncadd %s506, %s519
          %s521 = sadd.s32 %s34, %s33
          %s522 = smul.addr %s521, 64
          %s523 = scalar_lea.hbm %s5, %s522
          %s525 = sshll.u32 %s509, 4
          %s526 = int_to_ptr.vmem [resolvable:$true] %s525
          %528 = dma.vmem_to_hbm [thread:$0]  %s526, 64, %s523, %s506
        $region64: #{tpu_custom_call.1} parent=39 // pred_fallthru
          _
        // Predicated region
        $region65: #{tpu_custom_call.1} parent=39 // pred_check
          %p529 = pneg %p201
        $region66: #{tpu_custom_call.1} parent=39 // pred_check_branch
          %531 = sbr.rel (%p529) target = $region68
        $region67: #{tpu_custom_call.1} parent=39 // pred_region
          %s533 = ssub.s32 64, 64
          %534 = vsyncadd %s511, %s533
          %s535 = sadd.s32 %s34, %s33
          %s536 = smul.addr %s535, 64
          %s537 = scalar_lea.hbm %s6, %s536
          %s539 = sshll.u32 %s514, 4
          %s540 = int_to_ptr.vmem [resolvable:$true] %s539
          %542 = dma.vmem_to_hbm [thread:$0]  %s540, 64, %s537, %s511
        $region68: #{tpu_custom_call.1} parent=39 // pred_fallthru
          _
      $region40: #{tpu_custom_call.1} parent=5 // pred_fallthru
        _
      %p543 = scmp.le.s32.totalorder 2, %s24
      // Predicated region
      $region69: #{tpu_custom_call.1} parent=5 // pred_check
        %p544 = pneg %p543
      $region70: #{tpu_custom_call.1} parent=5 // pred_check_branch
        %546 = sbr.rel (%p544) target = $region72
      $region71: #{tpu_custom_call.1} parent=5 // pred_region
        %s547 = ssub.s32 %s24, 2
        // Predicated region
        $region73: #{tpu_custom_call.1} parent=71 // pred_check
          %p548 = pneg %p179
        $region74: #{tpu_custom_call.1} parent=71 // pred_check_branch
          %550 = sbr.rel (%p548) target = $region76
        $region75: #{tpu_custom_call.1} parent=71 // pred_region
          %s551 = sand.u32 %s164, 1
          %s552 = scalar_lea.sflag [#allocation4], %s551
          %s553 = sand.u32 %s164, 1
          %s554 = smul.addr %s553, 4
          %s555 = scalar_lea.vmem [#allocation11], %s554
          %556 = dma.done %s552, 64
        $region76: #{tpu_custom_call.1} parent=71 // pred_fallthru
          _
        // Predicated region
        $region77: #{tpu_custom_call.1} parent=71 // pred_check
          %p557 = pneg %p207
        $region78: #{tpu_custom_call.1} parent=71 // pred_check_branch
          %559 = sbr.rel (%p557) target = $region80
        $region79: #{tpu_custom_call.1} parent=71 // pred_region
          %s560 = sand.u32 %s192, 1
          %s561 = scalar_lea.sflag [#allocation13], %s560
          %s562 = sand.u32 %s192, 1
          %s563 = smul.addr %s562, 4
          %s564 = scalar_lea.vmem [#allocation12], %s563
          %565 = dma.done %s561, 64
        $region80: #{tpu_custom_call.1} parent=71 // pred_fallthru
          _
      $region72: #{tpu_custom_call.1} parent=5 // pred_fallthru
        _
    $region6: #{tpu_custom_call.1} parent=1 // loop_footer
      %s28 = sadd.s32 1, %s24
    $region7: #{tpu_custom_call.1} parent=1 // loop_footer_branch
      %23 = sbr.rel target = $region3
    $region8: #{tpu_custom_call.1} parent=1 // loop_exit
      _
    %566 = vsyncpa [#allocation3], 1
    %s567 = scalar_lea.sflag [#allocation3], 1
    %568 = vsyncpa %s567, 1
    %569 = vsyncpa [#allocation6], 1
    %570 = vsyncpa [#allocation9], 1
    %571 = vsyncpa [#allocation4], 1
    %s572 = scalar_lea.sflag [#allocation4], 1
    %573 = vsyncpa %s572, 1
    %574 = vsyncpa [#allocation13], 1
    %s575 = scalar_lea.sflag [#allocation13], 1
    %576 = vsyncpa %s575, 1

</llo_original>
